<compile_context>
chip_gen: v7x
topology: tpu7x:2x2x1
jax: 0.10.0
libtpu: 0.0.40
codegen_flags: <defaults>
</compile_context>

<pallas_src>
import functools

import jax
import jax.numpy as jnp
from jax import lax
from jax.experimental import pallas as pl
from jax.experimental.pallas import tpu as pltpu


IN_DIM, HID_DIM, OUT_DIM = 784, 200, 10
HID_PAD, OUT_PAD = 256, 128          # lane-dense (multiples of 128)
MAX_TM = 1024                        # M-tile cap


# ----------------------------------------------------------------------------
# Fused kernel: out = log_softmax(relu(x @ w1 + b1) @ w2 + b2)[:, :10]
# ----------------------------------------------------------------------------
def _logistic_kernel(x_ref, w1_ref, b1_ref, w2_ref, b2_ref, o_ref, *, out_dim):
    x = x_ref[...]                                             # (tm, 784) f32
    # fc1 + ReLU (bf16 weights upcast in VMEM, f32 MXU accumulation)
    h = jnp.dot(x, w1_ref[...].astype(jnp.float32),
                preferred_element_type=jnp.float32)
    h = jnp.maximum(h + b1_ref[...], 0.0)
    # fc2
    logits = jnp.dot(h, w2_ref[...].astype(jnp.float32),
                     preferred_element_type=jnp.float32)
    logits = logits + b2_ref[...]                              # (tm, 128)
    # log-softmax over the first `out_dim` (real) columns
    col = lax.broadcasted_iota(jnp.int32, logits.shape, 1)
    valid = col < out_dim
    masked = jnp.where(valid, logits, jnp.float32(-1e30))
    m = jnp.max(masked, axis=-1, keepdims=True)
    e = jnp.exp(masked - m)            # padded cols underflow to exactly 0
    lse = jnp.log(jnp.sum(e, axis=-1, keepdims=True)) + m
    o_ref[...] = (logits - lse)[:, :out_dim]                   # (tm, 10)


def prepare_params(params):
    """Pre-transpose + zero-pad weights once (outside the hot path), bf16."""
    w1p = jnp.zeros((IN_DIM, HID_PAD), jnp.bfloat16)
    w1p = w1p.at[:, :HID_DIM].set(params["w1"].T.astype(jnp.bfloat16))
    b1p = jnp.zeros((1, HID_PAD), jnp.float32).at[0, :HID_DIM].set(params["b1"])
    w2p = jnp.zeros((HID_PAD, OUT_PAD), jnp.bfloat16)
    w2p = w2p.at[:HID_DIM, :OUT_DIM].set(params["w2"].T.astype(jnp.bfloat16))
    b2p = jnp.zeros((1, OUT_PAD), jnp.float32).at[0, :OUT_DIM].set(params["b2"])
    return w1p, b1p, w2p, b2p


def _choose_tm(m):
    # >= 2 grid steps along the "parallel" axis when m >= 16 (v7x megacore),
    # tile capped so VMEM/per-step overhead stay reasonable everywhere.
    if m <= 8:
        return 8
    tm = ((-(-m // 2)) + 7) // 8 * 8          # round_up(cdiv(m, 2), 8)
    return min(MAX_TM, tm)


@functools.partial(jax.jit, static_argnames=("out_dim",))
def logistic_forward(prepped, x, *, out_dim=OUT_DIM):
    w1p, b1p, w2p, b2p = prepped
    M, K = x.shape
    assert K == IN_DIM
    x = x.astype(jnp.float32)

    tm = _choose_tm(M)
    grid_m = pl.cdiv(M, tm)

    flops = 2 * M * (IN_DIM * HID_PAD + HID_PAD * OUT_PAD)
    bytes_accessed = (M * IN_DIM * 4                 # x read
                      + IN_DIM * HID_PAD * 2         # w1 (bf16)
                      + HID_PAD * OUT_PAD * 2        # w2 (bf16)
                      + (HID_PAD + OUT_PAD) * 4      # biases
                      + M * out_dim * 4)             # output write

    return pl.pallas_call(
        functools.partial(_logistic_kernel, out_dim=out_dim),
        out_shape=jax.ShapeDtypeStruct((M, out_dim), jnp.float32),
        grid=(grid_m,),
        in_specs=[
            pl.BlockSpec((tm, IN_DIM), lambda i: (i, 0)),      # x (full K)
            pl.BlockSpec((IN_DIM, HID_PAD), lambda i: (0, 0)),  # w1
            pl.BlockSpec((1, HID_PAD), lambda i: (0, 0)),       # b1
            pl.BlockSpec((HID_PAD, OUT_PAD), lambda i: (0, 0)),  # w2
            pl.BlockSpec((1, OUT_PAD), lambda i: (0, 0)),        # b2
        ],
        out_specs=pl.BlockSpec((tm, out_dim), lambda i: (i, 0)),
        compiler_params=pltpu.CompilerParams(
            dimension_semantics=("parallel",),
            vmem_limit_bytes=32 * 1024 * 1024),
        cost_estimate=pl.CostEstimate(
            flops=flops,
            transcendentals=M * OUT_PAD,
            bytes_accessed=bytes_accessed),
    )(x, w1p, b1p, w2p, b2p)


# ----------------------------------------------------------------------------
# Parameters (deterministic, PyTorch-like uniform(-1/sqrt(fan_in), +1/sqrt(fan_in)))
# ----------------------------------------------------------------------------
def init_params(key):
    ks = jax.random.split(key, 4)

    def unif(k, shape, fan_in):
        bound = 1.0 / (fan_in ** 0.5)
        return jax.random.uniform(k, shape, jnp.float32, -bound, bound)

    return {
        "w1": unif(ks[0], (HID_DIM, IN_DIM), IN_DIM),   # torch layout (out, in)
        "b1": unif(ks[1], (HID_DIM,), IN_DIM),
        "w2": unif(ks[2], (OUT_DIM, HID_DIM), HID_DIM),
        "b2": unif(ks[3], (OUT_DIM,), HID_DIM),
    }


# ----------------------------------------------------------------------------
# Pure-JAX reference (matches the PyTorch module semantics, full f32)
# ----------------------------------------------------------------------------
def reference_forward(params, x):
    h = jnp.maximum(x @ params["w1"].T + params["b1"], 0.0)
    logits = h @ params["w2"].T + params["b2"]
    return jax.nn.log_softmax(logits, axis=1)


if __name__ == "__main__":
    key = jax.random.PRNGKey(0)
    kx, kp = jax.random.split(key)

    batch = 2
    x = jax.random.normal(kx, (batch, IN_DIM), jnp.float32)    # (2, 784)
    params = init_params(kp)
    prepped = prepare_params(params)

    y = jax.block_until_ready(logistic_forward(prepped, x))
    y_ref = jax.block_until_ready(reference_forward(params, x))

    assert y.shape == (batch, OUT_DIM)
    # Loose tolerance accounts for the deliberate bf16 weight storage.
    assert jnp.allclose(y, y_ref, rtol=1e-2, atol=1e-2)
    print("KERNEL_OK")
</pallas_src>

<mosaic_0001>
module attributes {stable_mosaic.version = 11 : i64} {
  func.func @_logistic_kernel(%arg0: i32, %arg1: memref<8x784xf32, #tpu.memory_space<vmem>>, %arg2: memref<784x256xbf16, #tpu.memory_space<vmem>>, %arg3: memref<1x256xf32, #tpu.memory_space<vmem>>, %arg4: memref<256x128xbf16, #tpu.memory_space<vmem>>, %arg5: memref<1x128xf32, #tpu.memory_space<vmem>>, %arg6: memref<8x10xf32, #tpu.memory_space<vmem>>) attributes {dimension_semantics = [#tpu.dimension_semantics<parallel>], iteration_bounds = array<i64: 1>, scalar_prefetch = 0 : i64, scratch_operands = 0 : i64, tpu.core_type = #tpu.core_type<tc>, window_params = [{transform_indices = @transform_0, window_bounds = array<i64: 8, 784>}, {pipeline_mode = #tpu.pipeline_mode<synchronous>, transform_indices = @transform_1, window_bounds = array<i64: 784, 256>}, {pipeline_mode = #tpu.pipeline_mode<synchronous>, transform_indices = @transform_2, window_bounds = array<i64: 1, 256>}, {pipeline_mode = #tpu.pipeline_mode<synchronous>, transform_indices = @transform_3, window_bounds = array<i64: 256, 128>}, {pipeline_mode = #tpu.pipeline_mode<synchronous>, transform_indices = @transform_4, window_bounds = array<i64: 1, 128>}, {transform_indices = @transform_5, window_bounds = array<i64: 8, 10>}]} {
    %c0 = arith.constant 0 : index
    %c0_0 = arith.constant 0 : index
    %0 = vector.load %arg1[%c0, %c0_0] : memref<8x784xf32, #tpu.memory_space<vmem>>, vector<8x784xf32>
    %c0_1 = arith.constant 0 : index
    %c0_2 = arith.constant 0 : index
    %1 = vector.load %arg2[%c0_1, %c0_2] : memref<784x256xbf16, #tpu.memory_space<vmem>>, vector<784x256xbf16>
    %2 = arith.extf %1 : vector<784x256xbf16> to vector<784x256xf32>
    %cst = arith.constant dense<0.000000e+00> : vector<8x256xf32>
    %3 = tpu.matmul %0, %2, %cst {dimension_numbers = #tpu.dot_dimension_numbers<[1], [0], [0], [1], [0, 0, 1, 1], [], []>} : vector<8x784xf32>, vector<784x256xf32>, vector<8x256xf32> -> vector<8x256xf32>
    %c0_3 = arith.constant 0 : index
    %c0_4 = arith.constant 0 : index
    %4 = vector.load %arg3[%c0_3, %c0_4] : memref<1x256xf32, #tpu.memory_space<vmem>>, vector<1x256xf32>
    %5 = vector.broadcast %4 : vector<1x256xf32> to vector<8x256xf32>
    %6 = arith.addf %3, %5 : vector<8x256xf32>
    %cst_5 = arith.constant 0.000000e+00 : f32
    %7 = vector.broadcast %cst_5 : f32 to vector<8x256xf32>
    %8 = arith.maximumf %6, %7 : vector<8x256xf32>
    %c0_6 = arith.constant 0 : index
    %c0_7 = arith.constant 0 : index
    %9 = vector.load %arg4[%c0_6, %c0_7] : memref<256x128xbf16, #tpu.memory_space<vmem>>, vector<256x128xbf16>
    %10 = arith.extf %9 : vector<256x128xbf16> to vector<256x128xf32>
    %cst_8 = arith.constant dense<0.000000e+00> : vector<8x128xf32>
    %11 = tpu.matmul %8, %10, %cst_8 {dimension_numbers = #tpu.dot_dimension_numbers<[1], [0], [0], [1], [0, 0, 1, 1], [], []>} : vector<8x256xf32>, vector<256x128xf32>, vector<8x128xf32> -> vector<8x128xf32>
    %c0_9 = arith.constant 0 : index
    %c0_10 = arith.constant 0 : index
    %12 = vector.load %arg5[%c0_9, %c0_10] : memref<1x128xf32, #tpu.memory_space<vmem>>, vector<1x128xf32>
    %13 = vector.broadcast %12 : vector<1x128xf32> to vector<8x128xf32>
    %14 = arith.addf %11, %13 : vector<8x128xf32>
    %15 = tpu.iota {dimensions = array<i32: 1>} : vector<8x128xi32>
    %c10_i32 = arith.constant 10 : i32
    %16 = vector.broadcast %c10_i32 : i32 to vector<8x128xi32>
    %17 = arith.cmpi slt, %15, %16 : vector<8x128xi32>
    %cst_11 = arith.constant -1.000000e+30 : f32
    %18 = vector.broadcast %cst_11 : f32 to vector<8x128xf32>
    %19 = arith.select %17, %14, %18 : vector<8x128xi1>, vector<8x128xf32>
    %cst_12 = arith.constant dense<0xFF800000> : vector<8xf32>
    %20 = vector.multi_reduction <maximumf>, %19, %cst_12 [1] : vector<8x128xf32> to vector<8xf32>
    %21 = vector.shape_cast %20 : vector<8xf32> to vector<8x1xf32>
    %22 = vector.broadcast %21 : vector<8x1xf32> to vector<8x128xf32>
    %23 = arith.subf %19, %22 : vector<8x128xf32>
    %24 = math.exp %23 : vector<8x128xf32>
    %cst_13 = arith.constant dense<0.000000e+00> : vector<8xf32>
    %25 = vector.multi_reduction <add>, %24, %cst_13 [1] : vector<8x128xf32> to vector<8xf32>
    %26 = vector.shape_cast %25 : vector<8xf32> to vector<8x1xf32>
    %27 = math.log %26 : vector<8x1xf32>
    %28 = arith.addf %27, %21 : vector<8x1xf32>
    %29 = vector.broadcast %28 : vector<8x1xf32> to vector<8x128xf32>
    %30 = arith.subf %14, %29 : vector<8x128xf32>
    %31 = vector.extract_strided_slice %30 {offsets = [0, 0], sizes = [8, 10], strides = [1, 1]} : vector<8x128xf32> to vector<8x10xf32>
    %c0_14 = arith.constant 0 : index
    %c0_15 = arith.constant 0 : index
    %32 = vector.load %arg6[%c0_14, %c0_15] : memref<8x10xf32, #tpu.memory_space<vmem>>, vector<8x10xf32>
    tpu.vector_store %arg6[%c0_14, %c0_15], %31 {strides = array<i32>} : memref<8x10xf32, #tpu.memory_space<vmem>>, vector<8x10xf32>,
    return
  }
  func.func @transform_0(%arg0: i32) -> (i32, i32) {
    %c0_i32 = arith.constant 0 : i32
    %c0_i32_0 = arith.constant 0 : i32
    return %arg0, %c0_i32 : i32, i32
  }
  func.func @transform_1(%arg0: i32) -> (i32, i32) {
    %c0_i32 = arith.constant 0 : i32
    %c0_i32_0 = arith.constant 0 : i32
    %c0_i32_1 = arith.constant 0 : i32
    return %c0_i32, %c0_i32_0 : i32, i32
  }
  func.func @transform_2(%arg0: i32) -> (i32, i32) {
    %c0_i32 = arith.constant 0 : i32
    %c0_i32_0 = arith.constant 0 : i32
    %c0_i32_1 = arith.constant 0 : i32
    return %c0_i32, %c0_i32_0 : i32, i32
  }
  func.func @transform_3(%arg0: i32) -> (i32, i32) {
    %c0_i32 = arith.constant 0 : i32
    %c0_i32_0 = arith.constant 0 : i32
    %c0_i32_1 = arith.constant 0 : i32
    return %c0_i32, %c0_i32_0 : i32, i32
  }
  func.func @transform_4(%arg0: i32) -> (i32, i32) {
    %c0_i32 = arith.constant 0 : i32
    %c0_i32_0 = arith.constant 0 : i32
    %c0_i32_1 = arith.constant 0 : i32
    return %c0_i32, %c0_i32_0 : i32, i32
  }
  func.func @transform_5(%arg0: i32) -> (i32, i32) {
    %c0_i32 = arith.constant 0 : i32
    %c0_i32_0 = arith.constant 0 : i32
    return %arg0, %c0_i32 : i32, i32
  }
}

</mosaic_0001>

<llo_original>
// kernel: logistic_forward.1
$region0: #{logistic_forward.1}
  #allocation0 [shape = 'u32[]', space=smem, size = 0x4, offset = 0x4, fixed_abs, tag = 'smem constant byte address 0x4 - core index']
  #allocation1 [shape = 'u32[144,128]{1,0:T(1,128)}', space=vmem, size = 0x12000, scoped, tag = 'internal scratch']
  %s0 = inlined_call_operand.vmem [shape: f32[2,784], index: 0, kind: input, shape index: {}]
  %s1 = inlined_call_operand.hbm [shape: bf16[784,256], index: 1, kind: input, shape index: {}]
  %s2 = inlined_call_operand.hbm [shape: f32[1,256], index: 2, kind: input, shape index: {}]
  %s3 = inlined_call_operand.hbm [shape: bf16[256,128], index: 3, kind: input, shape index: {}]
  %s4 = inlined_call_operand.vmem [shape: f32[1,128], index: 4, kind: input, shape index: {}]
  %s5 = inlined_call_operand.hbm [shape: f32[2,10], index: 5, kind: output, shape index: {}]
  %s6 = sld [smem:[#allocation0]]
  $region42: #{logistic_forward.1} parent=0
    _
  %s8 = ssub.s32 1, %s6
  %s9 = scalar_select 0, %s8, %s6
  $region1: #{logistic_forward.1} parent=0
    #allocation2 [shape = 'u8[401408]{0}', space=vmem, size = 0x62000, scoped, tag = 'input window, operand 1, single buffered']
    #allocation3 [shape = 's32[1]{0}', space=sflag, size = 0x4, scoped, tag = 'scoped memory for logistic_forward.1']
    #allocation4 [shape = 's32[1]{0}', space=sflag, size = 0x4, scoped, tag = 'scoped memory for logistic_forward.1']
    #allocation5 [shape = 'u8[1024]{0}', space=vmem, size = 0x400, scoped, tag = 'input window, operand 2, single buffered']
    #allocation6 [shape = 's32[1]{0}', space=sflag, size = 0x4, scoped, tag = 'scoped memory for logistic_forward.1']
    #allocation7 [shape = 'u8[65536]{0}', space=vmem, size = 0x10000, scoped, tag = 'input window, operand 3, single buffered']
    #allocation8 [shape = 'u8[4096]{0}', space=vmem, size = 0x1000, scoped, tag = 'output window, operand 0, single buffered']
    %10 = vsyncpa [#allocation3], 0
    %11 = vsyncpa [#allocation6], 0
    %12 = vsyncpa [#allocation4], 0
    // Predicated region
    $region2: #{logistic_forward.1} parent=1 // pred_check
      _
    $region3: #{logistic_forward.1} parent=1 // pred_check_branch
      %14 = sbr.rel (0) target = $region5
    $region4: #{logistic_forward.1} parent=1 // pred_region
      _
    $region5: #{logistic_forward.1} parent=1 // pred_fallthru
      _
    // Predicated region
    $region6: #{logistic_forward.1} parent=1 // pred_check
      _
    $region7: #{logistic_forward.1} parent=1 // pred_check_branch
      %16 = sbr.rel (0) target = $region9
    $region8: #{logistic_forward.1} parent=1 // pred_region
      %s18 = ssub.s32 12544, 12544
      %19 = vsyncadd [#allocation3], %s18
      %s20 = sshll.u32 [#allocation2], 4
      %s21 = int_to_ptr.vmem [resolvable:$true] %s20
      %26 = dma.hbm_to_vmem [thread:$0]  %s1, 12544, %s21, [#allocation3], 128, 128, 8
    $region9: #{logistic_forward.1} parent=1 // pred_fallthru
      _
    // Predicated region
    $region10: #{logistic_forward.1} parent=1 // pred_check
      _
    $region11: #{logistic_forward.1} parent=1 // pred_check_branch
      %28 = sbr.rel (0) target = $region13
    $region12: #{logistic_forward.1} parent=1 // pred_region
      %s30 = ssub.s32 32, 32
      %31 = vsyncadd [#allocation6], %s30
      %s33 = sshll.u32 [#allocation5], 4
      %s34 = int_to_ptr.vmem [resolvable:$true] %s33
      %36 = dma.hbm_to_vmem [thread:$0]  %s2, 32, %s34, [#allocation6]
    $region13: #{logistic_forward.1} parent=1 // pred_fallthru
      _
    // Predicated region
    $region14: #{logistic_forward.1} parent=1 // pred_check
      _
    $region15: #{logistic_forward.1} parent=1 // pred_check_branch
      %38 = sbr.rel (0) target = $region17
    $region16: #{logistic_forward.1} parent=1 // pred_region
      %s40 = ssub.s32 2048, 2048
      %41 = vsyncadd [#allocation6], %s40
      %s42 = sshll.u32 [#allocation7], 4
      %s43 = int_to_ptr.vmem [resolvable:$true] %s42
      %48 = dma.hbm_to_vmem [thread:$0]  %s3, 2048, %s43, [#allocation6], 64, 64, 4
    $region17: #{logistic_forward.1} parent=1 // pred_fallthru
      _
    // Predicated region
    $region18: #{logistic_forward.1} parent=1 // pred_check
      _
    $region19: #{logistic_forward.1} parent=1 // pred_check_branch
      %50 = sbr.rel (0) target = $region21
    $region20: #{logistic_forward.1} parent=1 // pred_region
      _
    $region21: #{logistic_forward.1} parent=1 // pred_fallthru
      _
    // Predicated region
    $region22: #{logistic_forward.1} parent=1 // pred_check
      _
    $region23: #{logistic_forward.1} parent=1 // pred_check_branch
      %52 = sbr.rel (0) target = $region25
    $region24: #{logistic_forward.1} parent=1 // pred_region
      %53 = dma.done [#allocation3], 12544
    $region25: #{logistic_forward.1} parent=1 // pred_fallthru
      _
    // Predicated region
    $region26: #{logistic_forward.1} parent=1 // pred_check
      _
    $region27: #{logistic_forward.1} parent=1 // pred_check_branch
      %55 = sbr.rel (0) target = $region29
    $region28: #{logistic_forward.1} parent=1 // pred_region
      %56 = dma.done [#allocation6], 32
    $region29: #{logistic_forward.1} parent=1 // pred_fallthru
      _
    // Predicated region
    $region30: #{logistic_forward.1} parent=1 // pred_check
      _
    $region31: #{logistic_forward.1} parent=1 // pred_check_branch
      %58 = sbr.rel (0) target = $region33
    $region32: #{logistic_forward.1} parent=1 // pred_region
      %59 = dma.done [#allocation6], 2048
    $region33: #{logistic_forward.1} parent=1 // pred_fallthru
      _
    %v60 = vld [vmem:[%s0] sm:$0xff]
    %v61 = vld [vmem:[%s0 + $0x8] sm:$0x3f]
    %v62 = vld [vmem:[%s0 + $0xe] sm:$0xff]
    %v63 = vld [vmem:[%s0 + $0x16] sm:$0x3f]
    %v64 = vld [vmem:[%s0 + $0x1c] sm:$0xff]
    %v65 = vld [vmem:[%s0 + $0x24] sm:$0x3f]
    %v66 = vld [vmem:[%s0 + $0x2a] sm:$0xff]
    %v67 = vld [vmem:[%s0 + $0x32] sm:$0x3f]
    %v68 = vld [vmem:[#allocation2] sm:$0xff]
    %v69 = vld [vmem:[#allocation2 + $0x8] sm:$0xff]
    %v70 = vld [vmem:[#allocation2 + $0x10] sm:$0xff]
    %v71 = vld [vmem:[#allocation2 + $0x18] sm:$0xff]
    %v72 = vld [vmem:[#allocation2 + $0x20] sm:$0xff]
    %v73 = vld [vmem:[#allocation2 + $0x28] sm:$0xff]
    %v74 = vld [vmem:[#allocation2 + $0x30] sm:$0xff]
    %v75 = vld [vmem:[#allocation2 + $0x38] sm:$0xff]
    %v76 = vld [vmem:[#allocation2 + $0x40] sm:$0xff]
    %v77 = vld [vmem:[#allocation2 + $0x48] sm:$0xff]
    %v78 = vld [vmem:[#allocation2 + $0x50] sm:$0xff]
    %v79 = vld [vmem:[#allocation2 + $0x58] sm:$0xff]
    %v80 = vld [vmem:[#allocation2 + $0x60] sm:$0xff]
    %v81 = vld [vmem:[#allocation2 + $0x68] sm:$0xff]
    %v82 = vld [vmem:[#allocation2 + $0x70] sm:$0xff]
    %v83 = vld [vmem:[#allocation2 + $0x78] sm:$0xff]
    %v84 = vld [vmem:[#allocation2 + $0x80] sm:$0xff]
    %v85 = vld [vmem:[#allocation2 + $0x88] sm:$0xff]
    %v86 = vld [vmem:[#allocation2 + $0x90] sm:$0xff]
    %v87 = vld [vmem:[#allocation2 + $0x98] sm:$0xff]
    %v88 = vld [vmem:[#allocation2 + $0xa0] sm:$0xff]
    %v89 = vld [vmem:[#allocation2 + $0xa8] sm:$0xff]
    %v90 = vld [vmem:[#allocation2 + $0xb0] sm:$0xff]
    %v91 = vld [vmem:[#allocation2 + $0xb8] sm:$0xff]
    %v92 = vld [vmem:[#allocation2 + $0xc0] sm:$0xff]
    %v93 = vld [vmem:[#allocation2 + $0xc8] sm:$0xff]
    %v94 = vld [vmem:[#allocation2 + $0xd0] sm:$0xff]
    %v95 = vld [vmem:[#allocation2 + $0xd8] sm:$0xff]
    %v96 = vld [vmem:[#allocation2 + $0xe0] sm:$0xff]
    %v97 = vld [vmem:[#allocation2 + $0xe8] sm:$0xff]
    %v98 = vld [vmem:[#allocation2 + $0xf0] sm:$0xff]
    %v99 = vld [vmem:[#allocation2 + $0xf8] sm:$0xff]
    %v100 = vld [vmem:[#allocation2 + $0x100] sm:$0xff]
    %v101 = vld [vmem:[#allocation2 + $0x108] sm:$0xff]
    %v102 = vld [vmem:[#allocation2 + $0x110] sm:$0xff]
    %v103 = vld [vmem:[#allocation2 + $0x118] sm:$0xff]
    %v104 = vld [vmem:[#allocation2 + $0x120] sm:$0xff]
    %v105 = vld [vmem:[#allocation2 + $0x128] sm:$0xff]
    %v106 = vld [vmem:[#allocation2 + $0x130] sm:$0xff]
    %v107 = vld [vmem:[#allocation2 + $0x138] sm:$0xff]
    %v108 = vld [vmem:[#allocation2 + $0x140] sm:$0xff]
    %v109 = vld [vmem:[#allocation2 + $0x148] sm:$0xff]
    %v110 = vld [vmem:[#allocation2 + $0x150] sm:$0xff]
    %v111 = vld [vmem:[#allocation2 + $0x158] sm:$0xff]
    %v112 = vld [vmem:[#allocation2 + $0x160] sm:$0xff]
    %v113 = vld [vmem:[#allocation2 + $0x168] sm:$0xff]
    %v114 = vld [vmem:[#allocation2 + $0x170] sm:$0xff]
    %v115 = vld [vmem:[#allocation2 + $0x178] sm:$0xff]
    %v116 = vld [vmem:[#allocation2 + $0x180] sm:$0xff]
    %v117 = vld [vmem:[#allocation2 + $0x188] sm:$0xff]
    %v118 = vld [vmem:[#allocation2 + $0x190] sm:$0xff]
    %v119 = vld [vmem:[#allocation2 + $0x198] sm:$0xff]
    %v120 = vld [vmem:[#allocation2 + $0x1a0] sm:$0xff]
    %v121 = vld [vmem:[#allocation2 + $0x1a8] sm:$0xff]
    %v122 = vld [vmem:[#allocation2 + $0x1b0] sm:$0xff]
    %v123 = vld [vmem:[#allocation2 + $0x1b8] sm:$0xff]
    %v124 = vld [vmem:[#allocation2 + $0x1c0] sm:$0xff]
    %v125 = vld [vmem:[#allocation2 + $0x1c8] sm:$0xff]
    %v126 = vld [vmem:[#allocation2 + $0x1d0] sm:$0xff]
    %v127 = vld [vmem:[#allocation2 + $0x1d8] sm:$0xff]
    %v128 = vld [vmem:[#allocation2 + $0x1e0] sm:$0xff]
    %v129 = vld [vmem:[#allocation2 + $0x1e8] sm:$0xff]
    %v130 = vld [vmem:[#allocation2 + $0x1f0] sm:$0xff]
    %v131 = vld [vmem:[#allocation2 + $0x1f8] sm:$0xff]
    %v132 = vld [vmem:[#allocation2 + $0x200] sm:$0xff]
    %v133 = vld [vmem:[#allocation2 + $0x208] sm:$0xff]
    %v134 = vld [vmem:[#allocation2 + $0x210] sm:$0xff]
    %v135 = vld [vmem:[#allocation2 + $0x218] sm:$0xff]
    %v136 = vld [vmem:[#allocation2 + $0x220] sm:$0xff]
    %v137 = vld [vmem:[#allocation2 + $0x228] sm:$0xff]
    %v138 = vld [vmem:[#allocation2 + $0x230] sm:$0xff]
    %v139 = vld [vmem:[#allocation2 + $0x238] sm:$0xff]
    %v140 = vld [vmem:[#allocation2 + $0x240] sm:$0xff]
    %v141 = vld [vmem:[#allocation2 + $0x248] sm:$0xff]
    %v142 = vld [vmem:[#allocation2 + $0x250] sm:$0xff]
    %v143 = vld [vmem:[#allocation2 + $0x258] sm:$0xff]
    %v144 = vld [vmem:[#allocation2 + $0x260] sm:$0xff]
    %v145 = vld [vmem:[#allocation2 + $0x268] sm:$0xff]
    %v146 = vld [vmem:[#allocation2 + $0x270] sm:$0xff]
    %v147 = vld [vmem:[#allocation2 + $0x278] sm:$0xff]
    %v148 = vld [vmem:[#allocation2 + $0x280] sm:$0xff]
    %v149 = vld [vmem:[#allocation2 + $0x288] sm:$0xff]
    %v150 = vld [vmem:[#allocation2 + $0x290] sm:$0xff]
    %v151 = vld [vmem:[#allocation2 + $0x298] sm:$0xff]
    %v152 = vld [vmem:[#allocation2 + $0x2a0] sm:$0xff]
    %v153 = vld [vmem:[#allocation2 + $0x2a8] sm:$0xff]
    %v154 = vld [vmem:[#allocation2 + $0x2b0] sm:$0xff]
    %v155 = vld [vmem:[#allocation2 + $0x2b8] sm:$0xff]
    %v156 = vld [vmem:[#allocation2 + $0x2c0] sm:$0xff]
    %v157 = vld [vmem:[#allocation2 + $0x2c8] sm:$0xff]
    %v158 = vld [vmem:[#allocation2 + $0x2d0] sm:$0xff]
    %v159 = vld [vmem:[#allocation2 + $0x2d8] sm:$0xff]
    %v160 = vld [vmem:[#allocation2 + $0x2e0] sm:$0xff]
    %v161 = vld [vmem:[#allocation2 + $0x2e8] sm:$0xff]
    %v162 = vld [vmem:[#allocation2 + $0x2f0] sm:$0xff]
    %v163 = vld [vmem:[#allocation2 + $0x2f8] sm:$0xff]
    %v164 = vld [vmem:[#allocation2 + $0x300] sm:$0xff]
    %v165 = vld [vmem:[#allocation2 + $0x308] sm:$0xff]
    %v166 = vunpack.c.l.bf16 %v68
    %v167 = vunpack.c.h.bf16 %v68
    %v168 = vunpack.c.l.bf16 %v69
    %v169 = vunpack.c.h.bf16 %v69
    %v170 = vunpack.c.l.bf16 %v70
    %v171 = vunpack.c.h.bf16 %v70
    %v172 = vunpack.c.l.bf16 %v71
    %v173 = vunpack.c.h.bf16 %v71
    %v174 = vunpack.c.l.bf16 %v72
    %v175 = vunpack.c.h.bf16 %v72
    %v176 = vunpack.c.l.bf16 %v73
    %v177 = vunpack.c.h.bf16 %v73
    %v178 = vunpack.c.l.bf16 %v74
    %v179 = vunpack.c.h.bf16 %v74
    %v180 = vunpack.c.l.bf16 %v75
    %v181 = vunpack.c.h.bf16 %v75
    %v182 = vunpack.c.l.bf16 %v76
    %v183 = vunpack.c.h.bf16 %v76
    %v184 = vunpack.c.l.bf16 %v77
    %v185 = vunpack.c.h.bf16 %v77
    %v186 = vunpack.c.l.bf16 %v78
    %v187 = vunpack.c.h.bf16 %v78
    %v188 = vunpack.c.l.bf16 %v79
    %v189 = vunpack.c.h.bf16 %v79
    %v190 = vunpack.c.l.bf16 %v80
    %v191 = vunpack.c.h.bf16 %v80
    %v192 = vunpack.c.l.bf16 %v81
    %v193 = vunpack.c.h.bf16 %v81
    %v194 = vunpack.c.l.bf16 %v82
    %v195 = vunpack.c.h.bf16 %v82
    %v196 = vunpack.c.l.bf16 %v83
    %v197 = vunpack.c.h.bf16 %v83
    %v198 = vunpack.c.l.bf16 %v84
    %v199 = vunpack.c.h.bf16 %v84
    %v200 = vunpack.c.l.bf16 %v85
    %v201 = vunpack.c.h.bf16 %v85
    %v202 = vunpack.c.l.bf16 %v86
    %v203 = vunpack.c.h.bf16 %v86
    %v204 = vunpack.c.l.bf16 %v87
    %v205 = vunpack.c.h.bf16 %v87
    %v206 = vunpack.c.l.bf16 %v88
    %v207 = vunpack.c.h.bf16 %v88
    %v208 = vunpack.c.l.bf16 %v89
    %v209 = vunpack.c.h.bf16 %v89
    %v210 = vunpack.c.l.bf16 %v90
    %v211 = vunpack.c.h.bf16 %v90
    %v212 = vunpack.c.l.bf16 %v91
    %v213 = vunpack.c.h.bf16 %v91
    %v214 = vunpack.c.l.bf16 %v92
    %v215 = vunpack.c.h.bf16 %v92
    %v216 = vunpack.c.l.bf16 %v93
    %v217 = vunpack.c.h.bf16 %v93
    %v218 = vunpack.c.l.bf16 %v94
    %v219 = vunpack.c.h.bf16 %v94
    %v220 = vunpack.c.l.bf16 %v95
    %v221 = vunpack.c.h.bf16 %v95
    %v222 = vunpack.c.l.bf16 %v96
    %v223 = vunpack.c.h.bf16 %v96
    %v224 = vunpack.c.l.bf16 %v97
    %v225 = vunpack.c.h.bf16 %v97
    %v226 = vunpack.c.l.bf16 %v98
    %v227 = vunpack.c.h.bf16 %v98
    %v228 = vunpack.c.l.bf16 %v99
    %v229 = vunpack.c.h.bf16 %v99
    %v230 = vunpack.c.l.bf16 %v100
    %v231 = vunpack.c.h.bf16 %v100
    %v232 = vunpack.c.l.bf16 %v101
    %v233 = vunpack.c.h.bf16 %v101
    %v234 = vunpack.c.l.bf16 %v102
    %v235 = vunpack.c.h.bf16 %v102
    %v236 = vunpack.c.l.bf16 %v103
    %v237 = vunpack.c.h.bf16 %v103
    %v238 = vunpack.c.l.bf16 %v104
    %v239 = vunpack.c.h.bf16 %v104
    %v240 = vunpack.c.l.bf16 %v105
    %v241 = vunpack.c.h.bf16 %v105
    %v242 = vunpack.c.l.bf16 %v106
    %v243 = vunpack.c.h.bf16 %v106
    %v244 = vunpack.c.l.bf16 %v107
    %v245 = vunpack.c.h.bf16 %v107
    %v246 = vunpack.c.l.bf16 %v108
    %v247 = vunpack.c.h.bf16 %v108
    %v248 = vunpack.c.l.bf16 %v109
    %v249 = vunpack.c.h.bf16 %v109
    %v250 = vunpack.c.l.bf16 %v110
    %v251 = vunpack.c.h.bf16 %v110
    %v252 = vunpack.c.l.bf16 %v111
    %v253 = vunpack.c.h.bf16 %v111
    %v254 = vunpack.c.l.bf16 %v112
    %v255 = vunpack.c.h.bf16 %v112
    %v256 = vunpack.c.l.bf16 %v113
    %v257 = vunpack.c.h.bf16 %v113
    %v258 = vunpack.c.l.bf16 %v114
    %v259 = vunpack.c.h.bf16 %v114
    %v260 = vunpack.c.l.bf16 %v115
    %v261 = vunpack.c.h.bf16 %v115
    %v262 = vunpack.c.l.bf16 %v116
    %v263 = vunpack.c.h.bf16 %v116
    %v264 = vunpack.c.l.bf16 %v117
    %v265 = vunpack.c.h.bf16 %v117
    %v266 = vunpack.c.l.bf16 %v118
    %v267 = vunpack.c.h.bf16 %v118
    %v268 = vunpack.c.l.bf16 %v119
    %v269 = vunpack.c.h.bf16 %v119
    %v270 = vunpack.c.l.bf16 %v120
    %v271 = vunpack.c.h.bf16 %v120
    %v272 = vunpack.c.l.bf16 %v121
    %v273 = vunpack.c.h.bf16 %v121
    %v274 = vunpack.c.l.bf16 %v122
    %v275 = vunpack.c.h.bf16 %v122
    %v276 = vunpack.c.l.bf16 %v123
    %v277 = vunpack.c.h.bf16 %v123
    %v278 = vunpack.c.l.bf16 %v124
    %v279 = vunpack.c.h.bf16 %v124
    %v280 = vunpack.c.l.bf16 %v125
    %v281 = vunpack.c.h.bf16 %v125
    %v282 = vunpack.c.l.bf16 %v126
    %v283 = vunpack.c.h.bf16 %v126
    %v284 = vunpack.c.l.bf16 %v127
    %v285 = vunpack.c.h.bf16 %v127
    %v286 = vunpack.c.l.bf16 %v128
    %v287 = vunpack.c.h.bf16 %v128
    %v288 = vunpack.c.l.bf16 %v129
    %v289 = vunpack.c.h.bf16 %v129
    %v290 = vunpack.c.l.bf16 %v130
    %v291 = vunpack.c.h.bf16 %v130
    %v292 = vunpack.c.l.bf16 %v131
    %v293 = vunpack.c.h.bf16 %v131
    %v294 = vunpack.c.l.bf16 %v132
    %v295 = vunpack.c.h.bf16 %v132
    %v296 = vunpack.c.l.bf16 %v133
    %v297 = vunpack.c.h.bf16 %v133
    %v298 = vunpack.c.l.bf16 %v134
    %v299 = vunpack.c.h.bf16 %v134
    %v300 = vunpack.c.l.bf16 %v135
    %v301 = vunpack.c.h.bf16 %v135
    %v302 = vunpack.c.l.bf16 %v136
    %v303 = vunpack.c.h.bf16 %v136
    %v304 = vunpack.c.l.bf16 %v137
    %v305 = vunpack.c.h.bf16 %v137
    %v306 = vunpack.c.l.bf16 %v138
    %v307 = vunpack.c.h.bf16 %v138
    %v308 = vunpack.c.l.bf16 %v139
    %v309 = vunpack.c.h.bf16 %v139
    %v310 = vunpack.c.l.bf16 %v140
    %v311 = vunpack.c.h.bf16 %v140
    %v312 = vunpack.c.l.bf16 %v141
    %v313 = vunpack.c.h.bf16 %v141
    %v314 = vunpack.c.l.bf16 %v142
    %v315 = vunpack.c.h.bf16 %v142
    %v316 = vunpack.c.l.bf16 %v143
    %v317 = vunpack.c.h.bf16 %v143
    %v318 = vunpack.c.l.bf16 %v144
    %v319 = vunpack.c.h.bf16 %v144
    %v320 = vunpack.c.l.bf16 %v145
    %v321 = vunpack.c.h.bf16 %v145
    %v322 = vunpack.c.l.bf16 %v146
    %v323 = vunpack.c.h.bf16 %v146
    %v324 = vunpack.c.l.bf16 %v147
    %v325 = vunpack.c.h.bf16 %v147
    %v326 = vunpack.c.l.bf16 %v148
    %v327 = vunpack.c.h.bf16 %v148
    %v328 = vunpack.c.l.bf16 %v149
    %v329 = vunpack.c.h.bf16 %v149
    %v330 = vunpack.c.l.bf16 %v150
    %v331 = vunpack.c.h.bf16 %v150
    %v332 = vunpack.c.l.bf16 %v151
    %v333 = vunpack.c.h.bf16 %v151
    %v334 = vunpack.c.l.bf16 %v152
    %v335 = vunpack.c.h.bf16 %v152
    %v336 = vunpack.c.l.bf16 %v153
    %v337 = vunpack.c.h.bf16 %v153
    %v338 = vunpack.c.l.bf16 %v154
    %v339 = vunpack.c.h.bf16 %v154
    %v340 = vunpack.c.l.bf16 %v155
    %v341 = vunpack.c.h.bf16 %v155
    %v342 = vunpack.c.l.bf16 %v156
    %v343 = vunpack.c.h.bf16 %v156
    %v344 = vunpack.c.l.bf16 %v157
    %v345 = vunpack.c.h.bf16 %v157
    %v346 = vunpack.c.l.bf16 %v158
    %v347 = vunpack.c.h.bf16 %v158
    %v348 = vunpack.c.l.bf16 %v159
    %v349 = vunpack.c.h.bf16 %v159
    %v350 = vunpack.c.l.bf16 %v160
    %v351 = vunpack.c.h.bf16 %v160
    %v352 = vunpack.c.l.bf16 %v161
    %v353 = vunpack.c.h.bf16 %v161
    %v354 = vunpack.c.l.bf16 %v162
    %v355 = vunpack.c.h.bf16 %v162
    %v356 = vunpack.c.l.bf16 %v163
    %v357 = vunpack.c.h.bf16 %v163
    %v358 = vunpack.c.l.bf16 %v164
    %v359 = vunpack.c.h.bf16 %v164
    %v360 = vunpack.c.l.bf16 %v165
    %v361 = vunpack.c.h.bf16 %v165
    %v362 = vld [vmem:[#allocation5] sm:$0x3]
    %v364 = vlaneseq
    %v365 = vshrl.u32 %v364, 7
    %v366 = vsub.s32 0, %v365
    %v367 = vrot.slane %v362, %v366
    %v368 = vlaneseq
    %v369 = vshrl.u32 %v368, 7
    %v370 = vsub.s32 1, %v369
    %v371 = vrot.slane %v362, %v370
    %v382 = vcombine.low %v60, %v62
    %v383 = vcombine.high %v60, %v62
    %v384 = vcombine.low %v64, %v66
    %v385 = vcombine.high %v64, %v66
    %v387 = vunpack.c.l.s4 1983009808
    %v388 = vunpack.c.0.s8 %v387
    %v389 = vlaneseq
    %v390 = vshrl.u32 %v389, 7
    %v391 = vsub.s32 %v388, %v390
    %v392 = vrot.slane %v382, %v391
    %v394 = vunpack.c.l.s4 1983009808
    %v395 = vunpack.c.0.s8 %v394
    %v396 = vlaneseq
    %v397 = vshrl.u32 %v396, 7
    %v398 = vsub.s32 %v395, %v397
    %v399 = vrot.slane %v383, %v398
    %v401 = vunpack.c.l.s4 1983009808
    %v402 = vunpack.c.0.s8 %v401
    %v403 = vlaneseq
    %v404 = vshrl.u32 %v403, 7
    %v405 = vsub.s32 %v402, %v404
    %v406 = vrot.slane %v384, %v405
    %v408 = vunpack.c.l.s4 1983009808
    %v409 = vunpack.c.0.s8 %v408
    %v410 = vlaneseq
    %v411 = vshrl.u32 %v410, 7
    %v412 = vsub.s32 %v409, %v411
    %v413 = vrot.slane %v385, %v412
    %v414 = vcombine.low %v392, %v406
    %v415 = vcombine.high %v392, %v406
    %v416 = vcombine.low %v399, %v413
    %v417 = vcombine.high %v399, %v413
    %v418 = vcombine.low %v61, %v63
    %v419 = vcombine.high %v61, %v63
    %v420 = vcombine.low %v65, %v67
    %v421 = vcombine.high %v65, %v67
    %v423 = vunpack.c.l.s4 1983009808
    %v424 = vunpack.c.0.s8 %v423
    %v425 = vlaneseq
    %v426 = vshrl.u32 %v425, 7
    %v427 = vsub.s32 %v424, %v426
    %v428 = vrot.slane %v418, %v427
    %v430 = vunpack.c.l.s4 1983009808
    %v431 = vunpack.c.0.s8 %v430
    %v432 = vlaneseq
    %v433 = vshrl.u32 %v432, 7
    %v434 = vsub.s32 %v431, %v433
    %v435 = vrot.slane %v419, %v434
    %v437 = vunpack.c.l.s4 1983009808
    %v438 = vunpack.c.0.s8 %v437
    %v439 = vlaneseq
    %v440 = vshrl.u32 %v439, 7
    %v441 = vsub.s32 %v438, %v440
    %v442 = vrot.slane %v420, %v441
    %v444 = vunpack.c.l.s4 1983009808
    %v445 = vunpack.c.0.s8 %v444
    %v446 = vlaneseq
    %v447 = vshrl.u32 %v446, 7
    %v448 = vsub.s32 %v445, %v447
    %v449 = vrot.slane %v421, %v448
    %v450 = vcombine.low %v428, %v442
    %v451 = vcombine.high %v428, %v442
    %v452 = vcombine.low %v435, %v449
    %vm459 = vcmask 130048
    %v460 = vsel %vm459, %v452, 0
    %462 = vmatprep.subr.mxu0 %v167
    %463 = vmatpush1.msra.mxu0 %v166
    %464 = vmatprep.subr.mxu0 %v169
    %465 = vmatpush1.msra.mxu0 %v168
    %466 = vmatprep.subr.mxu0 %v171
    %467 = vmatpush1.msra.mxu0 %v170
    %468 = vmatprep.subr.mxu0 %v173
    %469 = vmatpush1.msra.mxu0 %v172
    %470 = vmatprep.subr.mxu0 %v175
    %471 = vmatpush1.msra.mxu0 %v174
    %472 = vmatprep.subr.mxu0 %v177
    %473 = vmatpush1.msra.mxu0 %v176
    %474 = vmatprep.subr.mxu0 %v179
    %475 = vmatpush1.msra.mxu0 %v178
    %476 = vmatprep.subr.mxu0 %v181
    %477 = vmatpush1.msra.mxu0 %v180
    %478 = vmatprep.subr.mxu0 %v183
    %479 = vmatpush1.msra.mxu0 %v182
    %480 = vmatprep.subr.mxu0 %v185
    %481 = vmatpush1.msra.mxu0 %v184
    %482 = vmatprep.subr.mxu0 %v187
    %483 = vmatpush1.msra.mxu0 %v186
    %484 = vmatprep.subr.mxu0 %v189
    %485 = vmatpush1.msra.mxu0 %v188
    %486 = vmatprep.subr.mxu0 %v191
    %487 = vmatpush1.msra.mxu0 %v190
    %488 = vmatprep.subr.mxu0 %v193
    %489 = vmatpush1.msra.mxu0 %v192
    %490 = vmatprep.subr.mxu0 %v195
    %491 = vmatpush1.msra.mxu0 %v194
    %492 = vmatprep.subr.mxu0 %v197
    %493 = vmatpush1.msra.mxu0 %v196
    %494 = vmatprep.subr.mxu0 %v199
    %495 = vmatpush1.msra.mxu0 %v198
    %496 = vmatprep.subr.mxu0 %v201
    %497 = vmatpush1.msra.mxu0 %v200
    %498 = vmatprep.subr.mxu0 %v203
    %499 = vmatpush1.msra.mxu0 %v202
    %500 = vmatprep.subr.mxu0 %v205
    %501 = vmatpush1.msra.mxu0 %v204
    %502 = vmatprep.subr.mxu0 %v207
    %503 = vmatpush1.msra.mxu0 %v206
    %504 = vmatprep.subr.mxu0 %v209
    %505 = vmatpush1.msra.mxu0 %v208
    %506 = vmatprep.subr.mxu0 %v211
    %507 = vmatpush1.msra.mxu0 %v210
    %508 = vmatprep.subr.mxu0 %v213
    %509 = vmatpush1.msra.mxu0 %v212
    %510 = vmatprep.subr.mxu0 %v215
    %511 = vmatpush1.msra.mxu0 %v214
    %512 = vmatprep.subr.mxu0 %v217
    %513 = vmatpush1.msra.mxu0 %v216
    %514 = vmatprep.subr.mxu0 %v219
    %515 = vmatpush1.msra.mxu0 %v218
    %516 = vmatprep.subr.mxu0 %v221
    %517 = vmatpush1.msra.mxu0 %v220
    %518 = vmatprep.subr.mxu0 %v223
    %519 = vmatpush1.msra.mxu0 %v222
    %520 = vmatprep.subr.mxu0 %v225
    %521 = vmatpush1.msra.mxu0 %v224
    %522 = vmatprep.subr.mxu0 %v227
    %523 = vmatpush1.msra.mxu0 %v226
    %524 = vmatprep.subr.mxu0 %v229
    %525 = vmatpush1.msra.mxu0 %v228
    %526 = vmatprep.mubr.f32.mxu0 %v415
    %527 = vmatmul.mubr.f32.gmra.mrb[0].mxu0 %v414
    %v528 = vpop.f32.mrb[0].mxu0
    %v529 = vadd.f32 %v367, %v528
    %v530 = vpop.f32.mrb[0].mxu0
    %v531 = vadd.f32 %v371, %v530
    %532 = vdwg.mxu0
    %533 = vmatprep.subr.mxu0 %v231
    %534 = vmatpush1.msra.mxu0 %v230
    %535 = vmatprep.subr.mxu0 %v233
    %536 = vmatpush1.msra.mxu0 %v232
    %537 = vmatprep.subr.mxu0 %v235
    %538 = vmatpush1.msra.mxu0 %v234
    %539 = vmatprep.subr.mxu0 %v237
    %540 = vmatpush1.msra.mxu0 %v236
    %541 = vmatprep.subr.mxu0 %v239
    %542 = vmatpush1.msra.mxu0 %v238
    %543 = vmatprep.subr.mxu0 %v241
    %544 = vmatpush1.msra.mxu0 %v240
    %545 = vmatprep.subr.mxu0 %v243
    %546 = vmatpush1.msra.mxu0 %v242
    %547 = vmatprep.subr.mxu0 %v245
    %548 = vmatpush1.msra.mxu0 %v244
    %549 = vmatprep.subr.mxu0 %v247
    %550 = vmatpush1.msra.mxu0 %v246
    %551 = vmatprep.subr.mxu0 %v249
    %552 = vmatpush1.msra.mxu0 %v248
    %553 = vmatprep.subr.mxu0 %v251
    %554 = vmatpush1.msra.mxu0 %v250
    %555 = vmatprep.subr.mxu0 %v253
    %556 = vmatpush1.msra.mxu0 %v252
    %557 = vmatprep.subr.mxu0 %v255
    %558 = vmatpush1.msra.mxu0 %v254
    %559 = vmatprep.subr.mxu0 %v257
    %560 = vmatpush1.msra.mxu0 %v256
    %561 = vmatprep.subr.mxu0 %v259
    %562 = vmatpush1.msra.mxu0 %v258
    %563 = vmatprep.subr.mxu0 %v261
    %564 = vmatpush1.msra.mxu0 %v260
    %565 = vmatprep.subr.mxu0 %v263
    %566 = vmatpush1.msra.mxu0 %v262
    %567 = vmatprep.subr.mxu0 %v265
    %568 = vmatpush1.msra.mxu0 %v264
    %569 = vmatprep.subr.mxu0 %v267
    %570 = vmatpush1.msra.mxu0 %v266
    %571 = vmatprep.subr.mxu0 %v269
    %572 = vmatpush1.msra.mxu0 %v268
    %573 = vmatprep.subr.mxu0 %v271
    %574 = vmatpush1.msra.mxu0 %v270
    %575 = vmatprep.subr.mxu0 %v273
    %576 = vmatpush1.msra.mxu0 %v272
    %577 = vmatprep.subr.mxu0 %v275
    %578 = vmatpush1.msra.mxu0 %v274
    %579 = vmatprep.subr.mxu0 %v277
    %580 = vmatpush1.msra.mxu0 %v276
    %581 = vmatprep.subr.mxu0 %v279
    %582 = vmatpush1.msra.mxu0 %v278
    %583 = vmatprep.subr.mxu0 %v281
    %584 = vmatpush1.msra.mxu0 %v280
    %585 = vmatprep.subr.mxu0 %v283
    %586 = vmatpush1.msra.mxu0 %v282
    %587 = vmatprep.subr.mxu0 %v285
    %588 = vmatpush1.msra.mxu0 %v284
    %589 = vmatprep.subr.mxu0 %v287
    %590 = vmatpush1.msra.mxu0 %v286
    %591 = vmatprep.subr.mxu0 %v289
    %592 = vmatpush1.msra.mxu0 %v288
    %593 = vmatprep.subr.mxu0 %v291
    %594 = vmatpush1.msra.mxu0 %v290
    %595 = vmatprep.subr.mxu0 %v293
    %596 = vmatpush1.msra.mxu0 %v292
    %597 = vmatprep.mubr.f32.mxu0 %v417
    %598 = vmatmul.mubr.f32.gmra.mrb[0].mxu0 %v416
    %v599 = vpop.f32.mrb[0].mxu0
    %v600 = vadd.f32 %v529, %v599
    %v601 = vpop.f32.mrb[0].mxu0
    %v602 = vadd.f32 %v531, %v601
    %603 = vdwg.mxu0
    %604 = vmatprep.subr.mxu0 %v295
    %605 = vmatpush1.msra.mxu0 %v294
    %606 = vmatprep.subr.mxu0 %v297
    %607 = vmatpush1.msra.mxu0 %v296
    %608 = vmatprep.subr.mxu0 %v299
    %609 = vmatpush1.msra.mxu0 %v298
    %610 = vmatprep.subr.mxu0 %v301
    %611 = vmatpush1.msra.mxu0 %v300
    %612 = vmatprep.subr.mxu0 %v303
    %613 = vmatpush1.msra.mxu0 %v302
    %614 = vmatprep.subr.mxu0 %v305
    %615 = vmatpush1.msra.mxu0 %v304
    %616 = vmatprep.subr.mxu0 %v307
    %617 = vmatpush1.msra.mxu0 %v306
    %618 = vmatprep.subr.mxu0 %v309
    %619 = vmatpush1.msra.mxu0 %v308
    %620 = vmatprep.subr.mxu0 %v311
    %621 = vmatpush1.msra.mxu0 %v310
    %622 = vmatprep.subr.mxu0 %v313
    %623 = vmatpush1.msra.mxu0 %v312
    %624 = vmatprep.subr.mxu0 %v315
    %625 = vmatpush1.msra.mxu0 %v314
    %626 = vmatprep.subr.mxu0 %v317
    %627 = vmatpush1.msra.mxu0 %v316
    %628 = vmatprep.subr.mxu0 %v319
    %629 = vmatpush1.msra.mxu0 %v318
    %630 = vmatprep.subr.mxu0 %v321
    %631 = vmatpush1.msra.mxu0 %v320
    %632 = vmatprep.subr.mxu0 %v323
    %633 = vmatpush1.msra.mxu0 %v322
    %634 = vmatprep.subr.mxu0 %v325
    %635 = vmatpush1.msra.mxu0 %v324
    %636 = vmatprep.subr.mxu0 %v327
    %637 = vmatpush1.msra.mxu0 %v326
    %638 = vmatprep.subr.mxu0 %v329
    %639 = vmatpush1.msra.mxu0 %v328
    %640 = vmatprep.subr.mxu0 %v331
    %641 = vmatpush1.msra.mxu0 %v330
    %642 = vmatprep.subr.mxu0 %v333
    %643 = vmatpush1.msra.mxu0 %v332
    %644 = vmatprep.subr.mxu0 %v335
    %645 = vmatpush1.msra.mxu0 %v334
    %646 = vmatprep.subr.mxu0 %v337
    %647 = vmatpush1.msra.mxu0 %v336
    %648 = vmatprep.subr.mxu0 %v339
    %649 = vmatpush1.msra.mxu0 %v338
    %650 = vmatprep.subr.mxu0 %v341
    %651 = vmatpush1.msra.mxu0 %v340
    %652 = vmatprep.subr.mxu0 %v343
    %653 = vmatpush1.msra.mxu0 %v342
    %654 = vmatprep.subr.mxu0 %v345
    %655 = vmatpush1.msra.mxu0 %v344
    %656 = vmatprep.subr.mxu0 %v347
    %657 = vmatpush1.msra.mxu0 %v346
    %658 = vmatprep.subr.mxu0 %v349
    %659 = vmatpush1.msra.mxu0 %v348
    %660 = vmatprep.subr.mxu0 %v351
    %661 = vmatpush1.msra.mxu0 %v350
    %662 = vmatprep.subr.mxu0 %v353
    %663 = vmatpush1.msra.mxu0 %v352
    %664 = vmatprep.subr.mxu0 %v355
    %665 = vmatpush1.msra.mxu0 %v354
    %666 = vmatprep.subr.mxu0 %v357
    %667 = vmatpush1.msra.mxu0 %v356
    %668 = vmatprep.mubr.f32.mxu0 %v451
    %669 = vmatmul.mubr.f32.gmra.mrb[0].mxu0 %v450
    %v670 = vpop.f32.mrb[0].mxu0
    %v671 = vadd.f32 %v600, %v670
    %v672 = vpop.f32.mrb[0].mxu0
    %v673 = vadd.f32 %v602, %v672
    %674 = vdwg.mxu0
    %675 = vmatprep.subr.mxu0 %v359
    %676 = vmatpush1.msra.mxu0 %v358
    %677 = vmatprep.subr.mxu0 %v361
    %678 = vmatpush1.msra.mxu0 %v360
    %679 = vmatprep.subr.mxu0 0.0
    %680 = vmatpush1.msra.mxu0 0.0
    %681 = vmatprep.subr.mxu0 0.0
    %682 = vmatpush1.msra.mxu0 0.0
    %683 = vmatprep.subr.mxu0 0.0
    %684 = vmatpush1.msra.mxu0 0.0
    %685 = vmatprep.subr.mxu0 0.0
    %686 = vmatpush1.msra.mxu0 0.0
    %687 = vmatprep.subr.mxu0 0.0
    %688 = vmatpush1.msra.mxu0 0.0
    %689 = vmatprep.subr.mxu0 0.0
    %690 = vmatpush1.msra.mxu0 0.0
    %691 = vmatprep.subr.mxu0 0.0
    %692 = vmatpush1.msra.mxu0 0.0
    %693 = vmatprep.subr.mxu0 0.0
    %694 = vmatpush1.msra.mxu0 0.0
    %695 = vmatprep.subr.mxu0 0.0
    %696 = vmatpush1.msra.mxu0 0.0
    %697 = vmatprep.subr.mxu0 0.0
    %698 = vmatpush1.msra.mxu0 0.0
    %699 = vmatprep.subr.mxu0 0.0
    %700 = vmatpush1.msra.mxu0 0.0
    %701 = vmatprep.subr.mxu0 0.0
    %702 = vmatpush1.msra.mxu0 0.0
    %703 = vmatprep.subr.mxu0 0.0
    %704 = vmatpush1.msra.mxu0 0.0
    %705 = vmatprep.subr.mxu0 0.0
    %706 = vmatpush1.msra.mxu0 0.0
    %707 = vmatprep.subr.mxu0 0.0
    %708 = vmatpush1.msra.mxu0 0.0
    %709 = vmatprep.subr.mxu0 0.0
    %710 = vmatpush1.msra.mxu0 0.0
    %711 = vmatprep.subr.mxu0 0.0
    %712 = vmatpush1.msra.mxu0 0.0
    %713 = vmatprep.subr.mxu0 0.0
    %714 = vmatpush1.msra.mxu0 0.0
    %715 = vmatprep.subr.mxu0 0.0
    %716 = vmatpush1.msra.mxu0 0.0
    %717 = vmatprep.subr.mxu0 0.0
    %718 = vmatpush1.msra.mxu0 0.0
    %719 = vmatprep.subr.mxu0 0.0
    %720 = vmatpush1.msra.mxu0 0.0
    %721 = vmatprep.subr.mxu0 0.0
    %722 = vmatpush1.msra.mxu0 0.0
    %723 = vmatprep.subr.mxu0 0.0
    %724 = vmatpush1.msra.mxu0 0.0
    %725 = vmatprep.subr.mxu0 0.0
    %726 = vmatpush1.msra.mxu0 0.0
    %727 = vmatprep.subr.mxu0 0.0
    %728 = vmatpush1.msra.mxu0 0.0
    %729 = vmatprep.subr.mxu0 0.0
    %730 = vmatpush1.msra.mxu0 0.0
    %731 = vmatprep.subr.mxu0 0.0
    %732 = vmatpush1.msra.mxu0 0.0
    %733 = vmatprep.subr.mxu0 0.0
    %734 = vmatpush1.msra.mxu0 0.0
    %735 = vmatprep.subr.mxu0 0.0
    %736 = vmatpush1.msra.mxu0 0.0
    %737 = vmatprep.subr.mxu0 0.0
    %738 = vmatpush1.msra.mxu0 0.0
    %739 = vmatprep.mubr.f32.mxu0 0.0
    %740 = vmatmul.mubr.f32.gmra.mrb[0].mxu0 %v460
    %v741 = vpop.f32.mrb[0].mxu0
    %v742 = vadd.f32 %v671, %v741
    %v743 = vpop.f32.mrb[0].mxu0
    %v744 = vadd.f32 %v673, %v743
    %745 = vdwg.mxu0
    %v746 = vmax.f32 %v742, 0.0
    %v747 = vmax.f32 %v744, 0.0
    %v748 = vld [vmem:[#allocation7] sm:$0xf]
    %v749 = vld [vmem:[#allocation7 + $0x4] sm:$0xf]
    %v750 = vld [vmem:[#allocation7 + $0x8] sm:$0xf]
    %v751 = vld [vmem:[#allocation7 + $0xc] sm:$0xf]
    %v752 = vld [vmem:[#allocation7 + $0x10] sm:$0xf]
    %v753 = vld [vmem:[#allocation7 + $0x14] sm:$0xf]
    %v754 = vld [vmem:[#allocation7 + $0x18] sm:$0xf]
    %v755 = vld [vmem:[#allocation7 + $0x1c] sm:$0xf]
    %v756 = vld [vmem:[#allocation7 + $0x20] sm:$0xf]
    %v757 = vld [vmem:[#allocation7 + $0x24] sm:$0xf]
    %v758 = vld [vmem:[#allocation7 + $0x28] sm:$0xf]
    %v759 = vld [vmem:[#allocation7 + $0x2c] sm:$0xf]
    %v760 = vld [vmem:[#allocation7 + $0x30] sm:$0xf]
    %v761 = vld [vmem:[#allocation7 + $0x34] sm:$0xf]
    %v762 = vld [vmem:[#allocation7 + $0x38] sm:$0xf]
    %v763 = vld [vmem:[#allocation7 + $0x3c] sm:$0xf]
    %v764 = vld [vmem:[#allocation7 + $0x40] sm:$0xf]
    %v765 = vld [vmem:[#allocation7 + $0x44] sm:$0xf]
    %v766 = vld [vmem:[#allocation7 + $0x48] sm:$0xf]
    %v767 = vld [vmem:[#allocation7 + $0x4c] sm:$0xf]
    %v768 = vld [vmem:[#allocation7 + $0x50] sm:$0xf]
    %v769 = vld [vmem:[#allocation7 + $0x54] sm:$0xf]
    %v770 = vld [vmem:[#allocation7 + $0x58] sm:$0xf]
    %v771 = vld [vmem:[#allocation7 + $0x5c] sm:$0xf]
    %v772 = vld [vmem:[#allocation7 + $0x60] sm:$0xf]
    %v773 = vld [vmem:[#allocation7 + $0x64] sm:$0xf]
    %v774 = vld [vmem:[#allocation7 + $0x68] sm:$0xf]
    %v775 = vld [vmem:[#allocation7 + $0x6c] sm:$0xf]
    %v776 = vld [vmem:[#allocation7 + $0x70] sm:$0xf]
    %v777 = vld [vmem:[#allocation7 + $0x74] sm:$0xf]
    %v778 = vld [vmem:[#allocation7 + $0x78] sm:$0xf]
    %v779 = vld [vmem:[#allocation7 + $0x7c] sm:$0xf]
    %v780 = vunpack.c.l.bf16 %v748
    %v781 = vunpack.c.l.bf16 %v749
    %v782 = vunpack.c.l.bf16 %v750
    %v783 = vunpack.c.l.bf16 %v751
    %v784 = vunpack.c.l.bf16 %v752
    %v785 = vunpack.c.l.bf16 %v753
    %v786 = vunpack.c.l.bf16 %v754
    %v787 = vunpack.c.l.bf16 %v755
    %v788 = vunpack.c.l.bf16 %v756
    %v789 = vunpack.c.l.bf16 %v757
    %v790 = vunpack.c.l.bf16 %v758
    %v791 = vunpack.c.l.bf16 %v759
    %v792 = vunpack.c.l.bf16 %v760
    %v793 = vunpack.c.l.bf16 %v761
    %v794 = vunpack.c.l.bf16 %v762
    %v795 = vunpack.c.l.bf16 %v763
    %v796 = vunpack.c.l.bf16 %v764
    %v797 = vunpack.c.l.bf16 %v765
    %v798 = vunpack.c.l.bf16 %v766
    %v799 = vunpack.c.l.bf16 %v767
    %v800 = vunpack.c.l.bf16 %v768
    %v801 = vunpack.c.l.bf16 %v769
    %v802 = vunpack.c.l.bf16 %v770
    %v803 = vunpack.c.l.bf16 %v771
    %v804 = vunpack.c.l.bf16 %v772
    %v805 = vunpack.c.l.bf16 %v773
    %v806 = vunpack.c.l.bf16 %v774
    %v807 = vunpack.c.l.bf16 %v775
    %v808 = vunpack.c.l.bf16 %v776
    %v809 = vunpack.c.l.bf16 %v777
    %v810 = vunpack.c.l.bf16 %v778
    %v811 = vunpack.c.l.bf16 %v779
    %v812 = vld [vmem:[%s4] sm:$0x1]
    %v814 = vlaneseq
    %v815 = vshrl.u32 %v814, 7
    %v816 = vsub.s32 0, %v815
    %v817 = vrot.slane %v812, %v816
    %819 = vmatprep.subr.mxu0 0.0
    %820 = vmatpush1.msra.mxu0 %v780
    %821 = vmatprep.subr.mxu0 0.0
    %822 = vmatpush1.msra.mxu0 %v781
    %823 = vmatprep.subr.mxu0 0.0
    %824 = vmatpush1.msra.mxu0 %v782
    %825 = vmatprep.subr.mxu0 0.0
    %826 = vmatpush1.msra.mxu0 %v783
    %827 = vmatprep.subr.mxu0 0.0
    %828 = vmatpush1.msra.mxu0 %v784
    %829 = vmatprep.subr.mxu0 0.0
    %830 = vmatpush1.msra.mxu0 %v785
    %831 = vmatprep.subr.mxu0 0.0
    %832 = vmatpush1.msra.mxu0 %v786
    %833 = vmatprep.subr.mxu0 0.0
    %834 = vmatpush1.msra.mxu0 %v787
    %835 = vmatprep.subr.mxu0 0.0
    %836 = vmatpush1.msra.mxu0 %v788
    %837 = vmatprep.subr.mxu0 0.0
    %838 = vmatpush1.msra.mxu0 %v789
    %839 = vmatprep.subr.mxu0 0.0
    %840 = vmatpush1.msra.mxu0 %v790
    %841 = vmatprep.subr.mxu0 0.0
    %842 = vmatpush1.msra.mxu0 %v791
    %843 = vmatprep.subr.mxu0 0.0
    %844 = vmatpush1.msra.mxu0 %v792
    %845 = vmatprep.subr.mxu0 0.0
    %846 = vmatpush1.msra.mxu0 %v793
    %847 = vmatprep.subr.mxu0 0.0
    %848 = vmatpush1.msra.mxu0 %v794
    %849 = vmatprep.subr.mxu0 0.0
    %850 = vmatpush1.msra.mxu0 %v795
    %851 = vmatprep.subr.mxu0 0.0
    %852 = vmatpush1.msra.mxu0 %v796
    %853 = vmatprep.subr.mxu0 0.0
    %854 = vmatpush1.msra.mxu0 %v797
    %855 = vmatprep.subr.mxu0 0.0
    %856 = vmatpush1.msra.mxu0 %v798
    %857 = vmatprep.subr.mxu0 0.0
    %858 = vmatpush1.msra.mxu0 %v799
    %859 = vmatprep.subr.mxu0 0.0
    %860 = vmatpush1.msra.mxu0 %v800
    %861 = vmatprep.subr.mxu0 0.0
    %862 = vmatpush1.msra.mxu0 %v801
    %863 = vmatprep.subr.mxu0 0.0
    %864 = vmatpush1.msra.mxu0 %v802
    %865 = vmatprep.subr.mxu0 0.0
    %866 = vmatpush1.msra.mxu0 %v803
    %867 = vmatprep.subr.mxu0 0.0
    %868 = vmatpush1.msra.mxu0 %v804
    %869 = vmatprep.subr.mxu0 0.0
    %870 = vmatpush1.msra.mxu0 %v805
    %871 = vmatprep.subr.mxu0 0.0
    %872 = vmatpush1.msra.mxu0 %v806
    %873 = vmatprep.subr.mxu0 0.0
    %874 = vmatpush1.msra.mxu0 %v807
    %875 = vmatprep.subr.mxu0 0.0
    %876 = vmatpush1.msra.mxu0 %v808
    %877 = vmatprep.subr.mxu0 0.0
    %878 = vmatpush1.msra.mxu0 %v809
    %879 = vmatprep.subr.mxu0 0.0
    %880 = vmatpush1.msra.mxu0 %v810
    %881 = vmatprep.subr.mxu0 0.0
    %882 = vmatpush1.msra.mxu0 %v811
    %883 = vmatprep.mubr.f32.mxu0 %v747
    %884 = vmatmul.mubr.f32.gmra.mrb[0].mxu0 %v746
    %v885 = vpop.f32.mrb[0].mxu0
    %v886 = vadd.f32 %v817, %v885
    %v887 = vpop.f32.mrb[0].mxu0
    %888 = vdwg.mxu0
    %v889 = vlaneseq
    %v890 = vand.u32 %v889, 127
    %vm891 = vcmp.lt.s32.totalorder %v890, 10
    %v892 = vsel %vm891, %v886, -1e+30
    %893 = vmax.xlane.f32.xlu0 %v892
    %v894 = vpop.xlane.xlu0 %893
    %v895 = vsub.f32 %v892, %v894
    %v896 = vmul.f32 %v895, 1.442695
    %v897 = vpow.pop %v896
    %898 = vadd.xlane.f32.xlu0 %v897
    %v899 = vpop.xlane.xlu0 %898
    %v900 = vlog2.pop %v899
    %v901 = vmul.f32 %v900, 0.6931472
    %v902 = vadd.f32 %v901, %v894
    %v903 = vsub.f32 %v886, %v902
    %vm904 = vcmask 80896
    %905 = vst.msk [vmem:[#allocation8] sm:$0xff] %vm904, %v903
    // Predicated region
    $region34: #{logistic_forward.1} parent=1 // pred_check
      _
    $region35: #{logistic_forward.1} parent=1 // pred_check_branch
      %907 = sbr.rel (0) target = $region37
    $region36: #{logistic_forward.1} parent=1 // pred_region
      %s909 = ssub.s32 128, 32
      %910 = vsyncadd [#allocation4], %s909
      %s911 = sshll.u32 [#allocation8], 4
      %s912 = int_to_ptr.vmem [resolvable:$true] %s911
      %917 = dma.vmem_to_hbm [thread:$0]  %s912, 32, %s5, [#allocation4], 32, 32, 2
    $region37: #{logistic_forward.1} parent=1 // pred_fallthru
      _
    // Predicated region
    $region38: #{logistic_forward.1} parent=1 // pred_check
      _
    $region39: #{logistic_forward.1} parent=1 // pred_check_branch
      %919 = sbr.rel (0) target = $region41
    $region40: #{logistic_forward.1} parent=1 // pred_region
      %920 = dma.done [#allocation4], 128
    $region41: #{logistic_forward.1} parent=1 // pred_fallthru
      _
    %921 = vsyncpa [#allocation3], 1
    %922 = vsyncpa [#allocation6], 1
    %923 = vsyncpa [#allocation4], 1

</llo_original>
